<compile_context>
chip_gen: v7x
topology: tpu7x:2x2x1
jax: 0.10.0
libtpu: 0.0.40
codegen_flags: <defaults>
</compile_context>

<pallas_src>
import functools
import math

import jax
import jax.numpy as jnp
from jax.experimental import pallas as pl
from jax.experimental.pallas import tpu as pltpu

_LANE = 128  # lane width; output N is padded to a multiple of this.


def _round_up(x, m):
    return ((x + m - 1) // m) * m


def _pick_tile(dim, candidates):
    """Largest candidate that evenly divides dim, else the full dim."""
    for c in candidates:
        if c <= dim and dim % c == 0:
            return c
    return dim


def _linear_kernel(x_ref, w_ref, b_ref, o_ref):
    """One (tm, tn) output tile; K (last grid axis) is the reduction axis.

    The f32 output block is resident across the K axis (its index_map ignores
    k), so it doubles as the accumulator -- no VMEM scratch, no final copy.
    """
    k = pl.program_id(2)

    @pl.when(k == 0)
    def _():
        o_ref[...] = jnp.zeros_like(o_ref)

    o_ref[...] += jnp.dot(
        x_ref[...], w_ref[...], preferred_element_type=jnp.float32
    )

    @pl.when(k == pl.num_programs(2) - 1)
    def _():
        o_ref[...] += b_ref[...]  # fused bias add, broadcast over tm sublanes


def _fused_linear(x_bf16, w_slab, b_slab):
    """(M, K) bf16 @ (K, N) bf16 + (1, N) f32 -> (M, N) f32.  N % 128 == 0."""
    M, K = x_bf16.shape
    Kw, N = w_slab.shape
    assert Kw == K and N % _LANE == 0

    tm = _pick_tile(M, (512, 256, 128, 64, 32, 16, 8))
    tn = _pick_tile(N, (512, 256, 128))
    tk = _pick_tile(K, (512, 256, 128))

    # Megacore heuristic: make sure the parallel (M, N) axes span >= 2 blocks
    # when the problem allows it so both v7x TensorCores get work.
    if (M // tm) * (N // tn) < 2:
        if tn >= 2 * _LANE:
            tn //= 2
        elif tm >= 16 and tm % 2 == 0:
            tm //= 2

    grid = (M // tm, N // tn, K // tk)

    # Deep reductions: a third pipeline buffer hides exposed DMA latency on
    # the streamed operands.  (Not triggered at toy sizes.)
    pipe = pl.Buffered(3) if grid[2] >= 8 else None

    def _spec(shape, imap):
        if pipe is None:
            return pl.BlockSpec(shape, imap)
        return pl.BlockSpec(shape, imap, pipeline_mode=pipe)

    # Scoped-VMEM request sized to what the tiles actually need (+headroom)
    # instead of a blanket 32 MiB -- leaves room for other fusions on v7x.
    tile_bytes = 2 * (tm * tk * 2 + tk * tn * 2 + tn * 4) + 2 * tm * tn * 4
    vmem_limit = int(min(max(4 * tile_bytes, 8 * 1024 * 1024), 64 * 1024 * 1024))

    cost = pl.CostEstimate(
        flops=2 * M * N * K,
        transcendentals=0,
        bytes_accessed=M * K * 2 + K * N * 2 + N * 4 + M * N * 4,
    )

    return pl.pallas_call(
        _linear_kernel,
        out_shape=jax.ShapeDtypeStruct((M, N), jnp.float32),
        grid=grid,
        in_specs=[
            _spec((tm, tk), lambda i, j, k: (i, k)),   # x tile
            _spec((tk, tn), lambda i, j, k: (k, j)),   # weight tile (bf16)
            pl.BlockSpec((1, tn), lambda i, j, k: (0, j)),  # bias strip (f32)
        ],
        out_specs=pl.BlockSpec((tm, tn), lambda i, j, k: (i, j)),
        compiler_params=pltpu.CompilerParams(
            dimension_semantics=("parallel", "parallel", "arbitrary"),
            vmem_limit_bytes=vmem_limit,
        ),
        cost_estimate=cost,
    )(x_bf16, w_slab, b_slab)


def prepare_expert_params(weights, biases, input_size, output_size):
    """Transpose / pad / cast nn.Linear params ONCE (reused across calls).

    `weights` / `biases` may be a single (OUT, IN) / (OUT,) array or a list of
    them (one per expert).  Multiple experts are fused by concatenating their
    lane-dense padded weight slabs along N, so a single pallas_call serves all
    of them and the parallel N grid axis has extent >= num_experts.

    Returns:
      w_slab: (input_size, num_experts * n_pad)  bf16   (MXU-ready)
      b_slab: (1,          num_experts * n_pad)  f32
      n_pad:  per-expert padded output width (multiple of 128)

    Note: K (input_size) is deliberately NOT padded -- the kernel carries it
    as a full-dim block when it is not a multiple of the tile candidates.
    """
    if not isinstance(weights, (list, tuple)):
        weights, biases = [weights], [biases]
    n_pad = _round_up(output_size, _LANE)
    w_cols, b_cols = [], []
    for w, b in zip(weights, biases):
        w_t = jnp.zeros((input_size, n_pad), jnp.float32)
        w_t = w_t.at[:, :output_size].set(jnp.transpose(w).astype(jnp.float32))
        w_cols.append(w_t.astype(jnp.bfloat16))
        b_col = jnp.zeros((1, n_pad), jnp.float32)
        b_col = b_col.at[:, :output_size].set(jnp.reshape(b, (1, -1)).astype(jnp.float32))
        b_cols.append(b_col)
    return jnp.concatenate(w_cols, axis=1), jnp.concatenate(b_cols, axis=1), n_pad


@functools.partial(jax.jit, static_argnums=(3,))
def quantum_expert_forward(x, w_slab, b_slab, output_size):
    """expert_weights = fc1(x) for a single QuantumExpertNetwork.

    x:      (B, input_size) f32
    w_slab: (input_size, N_pad) bf16   (prepared once)
    b_slab: (1, N_pad) f32
    returns (B, output_size) f32
    """
    out_p = _fused_linear(x.astype(jnp.bfloat16), w_slab, b_slab)
    # TODO(synk): QuantumCircuit(num_qubits) + VQC(expert_weights, qc) are
    # external quantum-circuit constructions with no Pallas/TPU equivalent.
    return out_p[:, :output_size]


@functools.partial(jax.jit, static_argnums=(3, 4))
def fused_experts_forward(x, w_slab, b_slab, output_size, n_pad):
    """All experts' fc1(x) in ONE lane-dense pallas_call (MoE-style usage)."""
    out_p = _fused_linear(x.astype(jnp.bfloat16), w_slab, b_slab)
    num_experts = w_slab.shape[1] // n_pad
    return [out_p[:, e * n_pad: e * n_pad + output_size] for e in range(num_experts)]


def reference_forward(x, w, b):
    # Plain-JAX reference of nn.Linear(input_size, output_size)(x)
    return x @ w.T + b


if __name__ == "__main__":
    # Module-faithful sizes: input_size=32, output_size=16, num_qubits=4, batch=8.
    batch, input_size, output_size, num_qubits = 8, 32, 16, 4
    num_experts = 4  # fused-slab demo: one call serves 4 experts, N grid >= 2

    key = jax.random.PRNGKey(0)
    keys = jax.random.split(key, 1 + 2 * num_experts)
    x = jax.random.normal(keys[0], (batch, input_size), dtype=jnp.float32)

    bound = 1.0 / math.sqrt(input_size)
    ws, bs = [], []
    for e in range(num_experts):
        ws.append(jax.random.uniform(
            keys[1 + 2 * e], (output_size, input_size),
            dtype=jnp.float32, minval=-bound, maxval=bound))
        bs.append(jax.random.uniform(
            keys[2 + 2 * e], (output_size,),
            dtype=jnp.float32, minval=-bound, maxval=bound))

    # --- Single expert: exact QuantumExpertNetwork.forward (fc1) semantics ---
    w_p, b_p, n_pad = prepare_expert_params(ws[0], bs[0], input_size, output_size)
    expert_weights = quantum_expert_forward(x, w_p, b_p, output_size)
    jax.block_until_ready(expert_weights)

    ref0 = reference_forward(x, ws[0], bs[0])
    assert expert_weights.shape == (batch, output_size)
    # bf16 MXU operands -> relaxed tolerance vs the f32 reference.
    assert jnp.allclose(expert_weights, ref0, atol=3e-2, rtol=3e-2), (
        float(jnp.max(jnp.abs(expert_weights - ref0))))

    # --- Fused multi-expert slab: one pallas_call, N axis spans >= 2 blocks ---
    w_slab, b_slab, n_pad = prepare_expert_params(ws, bs, input_size, output_size)
    fused = fused_experts_forward(x, w_slab, b_slab, output_size, n_pad)
    jax.block_until_ready(fused)
    for e in range(num_experts):
        ref_e = reference_forward(x, ws[e], bs[e])
        assert fused[e].shape == (batch, output_size)
        assert jnp.allclose(fused[e], ref_e, atol=3e-2, rtol=3e-2), (
            e, float(jnp.max(jnp.abs(fused[e] - ref_e))))

    print("KERNEL_OK")
</pallas_src>

<mosaic_0001>
module attributes {stable_mosaic.version = 11 : i64} {
  func.func @_linear_kernel(%arg0: i32, %arg1: i32, %arg2: i32, %arg3: memref<8x32xbf16, #tpu.memory_space<vmem>>, %arg4: memref<32x128xbf16, #tpu.memory_space<vmem>>, %arg5: memref<1x128xf32, #tpu.memory_space<vmem>>, %arg6: memref<8x128xf32, #tpu.memory_space<vmem>>) attributes {dimension_semantics = [#tpu.dimension_semantics<parallel>, #tpu.dimension_semantics<parallel>, #tpu.dimension_semantics<arbitrary>], iteration_bounds = array<i64: 1, 1, 1>, scalar_prefetch = 0 : i64, scratch_operands = 0 : i64, tpu.core_type = #tpu.core_type<tc>, window_params = [{transform_indices = @transform_0, window_bounds = array<i64: 8, 32>}, {transform_indices = @transform_1, window_bounds = array<i64: 32, 128>}, {transform_indices = @transform_2, window_bounds = array<i64: 1, 128>}, {transform_indices = @transform_3, window_bounds = array<i64: 8, 128>}]} {
    %c0_i32 = arith.constant 0 : i32
    %0 = arith.cmpi eq, %arg2, %c0_i32 : i32
    %1 = arith.extui %0 : i1 to i32
    %c0_i32_0 = arith.constant 0 : i32
    %2 = arith.cmpi ne, %1, %c0_i32_0 : i32
    scf.if %2 {
      %cst_10 = arith.constant 0.000000e+00 : f32
      %12 = vector.broadcast %cst_10 : f32 to vector<8x128xf32>
      %c0_11 = arith.constant 0 : index
      %c0_12 = arith.constant 0 : index
      %13 = vector.load %arg6[%c0_11, %c0_12] : memref<8x128xf32, #tpu.memory_space<vmem>>, vector<8x128xf32>
      tpu.vector_store %arg6[%c0_11, %c0_12], %12 {strides = array<i32>} : memref<8x128xf32, #tpu.memory_space<vmem>>, vector<8x128xf32>,
    } else {
    }
    %c0 = arith.constant 0 : index
    %c0_1 = arith.constant 0 : index
    %3 = vector.load %arg6[%c0, %c0_1] : memref<8x128xf32, #tpu.memory_space<vmem>>, vector<8x128xf32>
    %c0_2 = arith.constant 0 : index
    %c0_3 = arith.constant 0 : index
    %4 = vector.load %arg3[%c0_2, %c0_3] : memref<8x32xbf16, #tpu.memory_space<vmem>>, vector<8x32xbf16>
    %c0_4 = arith.constant 0 : index
    %c0_5 = arith.constant 0 : index
    %5 = vector.load %arg4[%c0_4, %c0_5] : memref<32x128xbf16, #tpu.memory_space<vmem>>, vector<32x128xbf16>
    %cst = arith.constant dense<0.000000e+00> : vector<8x128xf32>
    %6 = tpu.matmul %4, %5, %cst {dimension_numbers = #tpu.dot_dimension_numbers<[1], [0], [0], [1], [0, 0, 1, 1], [], []>} : vector<8x32xbf16>, vector<32x128xbf16>, vector<8x128xf32> -> vector<8x128xf32>
    %7 = arith.addf %3, %6 : vector<8x128xf32>
    %c0_6 = arith.constant 0 : index
    %c0_7 = arith.constant 0 : index
    %8 = vector.load %arg6[%c0_6, %c0_7] : memref<8x128xf32, #tpu.memory_space<vmem>>, vector<8x128xf32>
    tpu.vector_store %arg6[%c0_6, %c0_7], %7 {strides = array<i32>} : memref<8x128xf32, #tpu.memory_space<vmem>>, vector<8x128xf32>,
    %c0_i32_8 = arith.constant 0 : i32
    %9 = arith.cmpi eq, %arg2, %c0_i32_8 : i32
    %10 = arith.extui %9 : i1 to i32
    %c0_i32_9 = arith.constant 0 : i32
    %11 = arith.cmpi ne, %10, %c0_i32_9 : i32
    scf.if %11 {
      %c0_10 = arith.constant 0 : index
      %c0_11 = arith.constant 0 : index
      %12 = vector.load %arg6[%c0_10, %c0_11] : memref<8x128xf32, #tpu.memory_space<vmem>>, vector<8x128xf32>
      %c0_12 = arith.constant 0 : index
      %c0_13 = arith.constant 0 : index
      %13 = vector.load %arg5[%c0_12, %c0_13] : memref<1x128xf32, #tpu.memory_space<vmem>>, vector<1x128xf32>
      %14 = vector.broadcast %13 : vector<1x128xf32> to vector<8x128xf32>
      %15 = arith.addf %12, %14 : vector<8x128xf32>
      %c0_14 = arith.constant 0 : index
      %c0_15 = arith.constant 0 : index
      %16 = vector.load %arg6[%c0_14, %c0_15] : memref<8x128xf32, #tpu.memory_space<vmem>>, vector<8x128xf32>
      tpu.vector_store %arg6[%c0_14, %c0_15], %15 {strides = array<i32>} : memref<8x128xf32, #tpu.memory_space<vmem>>, vector<8x128xf32>,
    } else {
    }
    return
  }
  func.func @transform_0(%arg0: i32, %arg1: i32, %arg2: i32) -> (i32, i32) {
    %c0_i32 = arith.constant 0 : i32
    return %arg0, %arg2 : i32, i32
  }
  func.func @transform_1(%arg0: i32, %arg1: i32, %arg2: i32) -> (i32, i32) {
    %c0_i32 = arith.constant 0 : i32
    return %arg2, %arg1 : i32, i32
  }
  func.func @transform_2(%arg0: i32, %arg1: i32, %arg2: i32) -> (i32, i32) {
    %c0_i32 = arith.constant 0 : i32
    %c0_i32_0 = arith.constant 0 : i32
    return %c0_i32, %arg1 : i32, i32
  }
  func.func @transform_3(%arg0: i32, %arg1: i32, %arg2: i32) -> (i32, i32) {
    %c0_i32 = arith.constant 0 : i32
    return %arg0, %arg1 : i32, i32
  }
}

</mosaic_0001>

<llo_original>
// kernel: quantum_expert_forward.1
$region0: #{quantum_expert_forward.1}
  #allocation0 [shape = 'u32[]', space=smem, size = 0x4, offset = 0x4, fixed_abs, tag = 'smem constant byte address 0x4 - core index']
  #allocation1 [shape = 'u32[144,128]{1,0:T(1,128)}', space=vmem, size = 0x12000, scoped, tag = 'internal scratch']
  %s0 = inlined_call_operand.vmem [shape: bf16[8,32], index: 0, kind: input, shape index: {}]
  %s1 = inlined_call_operand.hbm [shape: bf16[32,128], index: 1, kind: input, shape index: {}]
  %s2 = inlined_call_operand.vmem [shape: f32[1,128], index: 2, kind: input, shape index: {}]
  %s3 = inlined_call_operand.hbm [shape: f32[8,128], index: 3, kind: output, shape index: {}]
  %s4 = sld [smem:[#allocation0]]
  $region34: #{quantum_expert_forward.1} parent=0
    _
  %s6 = ssub.s32 1, %s4
  %s7 = scalar_select 0, %s6, %s4
  $region1: #{quantum_expert_forward.1} parent=0
    #allocation2 [shape = 'u8[8192]{0}', space=vmem, size = 0x2000, scoped, tag = 'input window, operand 1, single buffered']
    #allocation3 [shape = 's32[1]{0}', space=sflag, size = 0x4, scoped, tag = 'scoped memory for quantum_expert_forward.1']
    #allocation4 [shape = 's32[1]{0}', space=sflag, size = 0x4, scoped, tag = 'scoped memory for quantum_expert_forward.1']
    #allocation5 [shape = 'u8[4096]{0}', space=vmem, size = 0x1000, scoped, tag = 'output window, operand 0, single buffered']
    %8 = vsyncpa [#allocation3], 0
    %9 = vsyncpa [#allocation4], 0
    // Predicated region
    $region2: #{quantum_expert_forward.1} parent=1 // pred_check
      _
    $region3: #{quantum_expert_forward.1} parent=1 // pred_check_branch
      %11 = sbr.rel (0) target = $region5
    $region4: #{quantum_expert_forward.1} parent=1 // pred_region
      _
    $region5: #{quantum_expert_forward.1} parent=1 // pred_fallthru
      _
    // Predicated region
    $region6: #{quantum_expert_forward.1} parent=1 // pred_check
      _
    $region7: #{quantum_expert_forward.1} parent=1 // pred_check_branch
      %13 = sbr.rel (0) target = $region9
    $region8: #{quantum_expert_forward.1} parent=1 // pred_region
      %s15 = ssub.s32 256, 256
      %16 = vsyncadd [#allocation3], %s15
      %s17 = sshll.u32 [#allocation2], 4
      %s18 = int_to_ptr.vmem [resolvable:$true] %s17
      %23 = dma.hbm_to_vmem [thread:$0]  %s1, 256, %s18, [#allocation3], 64, 64, 4
    $region9: #{quantum_expert_forward.1} parent=1 // pred_fallthru
      _
    // Predicated region
    $region10: #{quantum_expert_forward.1} parent=1 // pred_check
      _
    $region11: #{quantum_expert_forward.1} parent=1 // pred_check_branch
      %25 = sbr.rel (0) target = $region13
    $region12: #{quantum_expert_forward.1} parent=1 // pred_region
      _
    $region13: #{quantum_expert_forward.1} parent=1 // pred_fallthru
      _
    // Predicated region
    $region14: #{quantum_expert_forward.1} parent=1 // pred_check
      _
    $region15: #{quantum_expert_forward.1} parent=1 // pred_check_branch
      %27 = sbr.rel (0) target = $region17
    $region16: #{quantum_expert_forward.1} parent=1 // pred_region
      %28 = dma.done [#allocation3], 256
    $region17: #{quantum_expert_forward.1} parent=1 // pred_fallthru
      _
    %p30 = scmp.eq.s32.totalorder 0, 0
    // Predicated region
    $region18: #{quantum_expert_forward.1} parent=1 // pred_check
      %p31 = pneg %p30
    $region19: #{quantum_expert_forward.1} parent=1 // pred_check_branch
      %33 = sbr.rel (%p31) target = $region21
    $region20: #{quantum_expert_forward.1} parent=1 // pred_region
      %34 = vst [vmem:[#allocation5] sm:$0xff] 0.0
    $region21: #{quantum_expert_forward.1} parent=1 // pred_fallthru
      _
    %v35 = vld [vmem:[#allocation5] sm:$0xff]
    %v36 = vld [vmem:[%s0] sm:$0xf]
    %v37 = vld [vmem:[#allocation2] sm:$0xf]
    %v38 = vld [vmem:[#allocation2 + $0x4] sm:$0xf]
    %v39 = vld [vmem:[#allocation2 + $0x8] sm:$0xf]
    %v40 = vld [vmem:[#allocation2 + $0xc] sm:$0xf]
    %v45 = vunpack.c.l.b16 %v37
    %v46 = vunpack.c.l.b16 %v38
    %v47 = vunpack.c.l.b16 %v39
    %v48 = vunpack.c.l.b16 %v40
    %v49 = vpack.c.b16 %v46, %v45
    %v50 = vpack.c.b16 %v48, %v47
    %vm53 = vcmask 261120
    %v55 = vsel %vm53, %v36, 0
    %57 = vmatprep.subr.bf16.mxu0 0
    %58 = vmatpush1.bf16.msra.mxu0 %v49
    %59 = vmatprep.subr.bf16.mxu0 0
    %60 = vmatpush1.bf16.msra.mxu0 %v50
    %61 = vmatprep.subr.bf16.mxu0 0
    %62 = vmatpush1.bf16.msra.mxu0 0
    %63 = vmatprep.subr.bf16.mxu0 0
    %64 = vmatpush1.bf16.msra.mxu0 0
    %65 = vmatprep.subr.bf16.mxu0 0
    %66 = vmatpush1.bf16.msra.mxu0 0
    %67 = vmatprep.subr.bf16.mxu0 0
    %68 = vmatpush1.bf16.msra.mxu0 0
    %69 = vmatprep.subr.bf16.mxu0 0
    %70 = vmatpush1.bf16.msra.mxu0 0
    %71 = vmatprep.subr.bf16.mxu0 0
    %72 = vmatpush1.bf16.msra.mxu0 0
    %73 = vmatprep.subr.bf16.mxu0 0
    %74 = vmatpush1.bf16.msra.mxu0 0
    %75 = vmatprep.subr.bf16.mxu0 0
    %76 = vmatpush1.bf16.msra.mxu0 0
    %77 = vmatprep.subr.bf16.mxu0 0
    %78 = vmatpush1.bf16.msra.mxu0 0
    %79 = vmatprep.subr.bf16.mxu0 0
    %80 = vmatpush1.bf16.msra.mxu0 0
    %81 = vmatprep.subr.bf16.mxu0 0
    %82 = vmatpush1.bf16.msra.mxu0 0
    %83 = vmatprep.subr.bf16.mxu0 0
    %84 = vmatpush1.bf16.msra.mxu0 0
    %85 = vmatprep.subr.bf16.mxu0 0
    %86 = vmatpush1.bf16.msra.mxu0 0
    %87 = vmatprep.subr.bf16.mxu0 0
    %88 = vmatpush1.bf16.msra.mxu0 0
    %89 = vmatprep.mubr.bf16.mxu0 0
    %90 = vmatmul.mubr.bf16.gmra.mrb[0].mxu0 %v55
    %v91 = vpop.f32.mrb[0].mxu0
    %v92 = vadd.f32 0.0, %v91
    %v93 = vpop.f32.mrb[0].mxu0
    %v94 = vpop.f32.mrb[0].mxu0
    %v95 = vpop.f32.mrb[0].mxu0
    %96 = vdwg.mxu0
    %v97 = vadd.f32 %v35, %v92
    %98 = vst [vmem:[#allocation5] sm:$0xff] %v97
    // Predicated region
    $region22: #{quantum_expert_forward.1} parent=1 // pred_check
      %p99 = pneg %p30
    $region23: #{quantum_expert_forward.1} parent=1 // pred_check_branch
      %101 = sbr.rel (%p99) target = $region25
    $region24: #{quantum_expert_forward.1} parent=1 // pred_region
      %v102 = vld [vmem:[#allocation5] sm:$0xff]
      %v103 = vld [vmem:[%s2] sm:$0x1]
      %v105 = vlaneseq
      %v106 = vshrl.u32 %v105, 7
      %v107 = vsub.s32 0, %v106
      %v108 = vrot.slane %v103, %v107
      %v110 = vadd.f32 %v102, %v108
      %111 = vst [vmem:[#allocation5] sm:$0xff] %v110
    $region25: #{quantum_expert_forward.1} parent=1 // pred_fallthru
      _
    // Predicated region
    $region26: #{quantum_expert_forward.1} parent=1 // pred_check
      _
    $region27: #{quantum_expert_forward.1} parent=1 // pred_check_branch
      %113 = sbr.rel (0) target = $region29
    $region28: #{quantum_expert_forward.1} parent=1 // pred_region
      %s115 = ssub.s32 128, 128
      %116 = vsyncadd [#allocation4], %s115
      %s118 = sshll.u32 [#allocation5], 4
      %s119 = int_to_ptr.vmem [resolvable:$true] %s118
      %121 = dma.vmem_to_hbm [thread:$0]  %s119, 128, %s3, [#allocation4]
    $region29: #{quantum_expert_forward.1} parent=1 // pred_fallthru
      _
    // Predicated region
    $region30: #{quantum_expert_forward.1} parent=1 // pred_check
      _
    $region31: #{quantum_expert_forward.1} parent=1 // pred_check_branch
      %123 = sbr.rel (0) target = $region33
    $region32: #{quantum_expert_forward.1} parent=1 // pred_region
      %124 = dma.done [#allocation4], 128
    $region33: #{quantum_expert_forward.1} parent=1 // pred_fallthru
      _
    %125 = vsyncpa [#allocation3], 1
    %126 = vsyncpa [#allocation4], 1

</llo_original>
